<compile_context>
chip_gen: v6e
topology: v6e:2x2x1
jax: 0.10.0
libtpu: 0.0.40
codegen_flags: <defaults>
</compile_context>

<pallas_src>
import jax
import jax.numpy as jnp
from jax.experimental import pallas as pl
from jax.experimental.pallas import tpu as pltpu

DATA_SIZE = 36          # matches compute_loss's range(36)
ENCODED_SIZE = 8
HIDDEN_DIMS = [20, 16, 12]
# synthetic data_interface.encoded_categorical_feature_indices (contiguous groups)
CATEGORICAL_GROUPS = [[20, 21, 22, 23], [24, 25, 26, 27, 28],
                      [29, 30, 31, 32, 33, 34, 35]]
BN_EPS = 1e-5
LANE = 128
N_BLOCKS = 8            # enc0, enc1, enc2, fc_mu+fc_var (fused), dec0, dec1, dec2, final

# Packed-output lane layout (single 128-lane row per batch element).
MU_OFF = 36             # mu      at lanes 36..43
LV_OFF = 44             # logvar  at lanes 44..51
# The fused fc block ALSO emits logvar at lanes 0..7 so it lines up with eps
# (widened to lanes 0..7) for the reparameterization without any roll.


def _round_up(n, m):
    return (n + m - 1) // m * m


# --------------------------------------------------------------------------- kernel
def _vae_kernel(x_ref, eps_ref, w_ref, scale_ref, shift_ref, out_ref,
                xpad_ref, epad_ref):
    """One batch tile of the whole VAE forward (8 MXU passes)."""
    tb = out_ref.shape[0]
    lane = jax.lax.broadcasted_iota(jnp.int32, (tb, LANE), 1)

    def layer(h, li, relu):
        w = w_ref[li * LANE:(li + 1) * LANE, :]            # (128,128) zero-padded
        y = (jnp.dot(h, w, preferred_element_type=jnp.float32)
             * scale_ref[li:li + 1, :] + shift_ref[li:li + 1, :])
        return jnp.maximum(y, 0.0) if relu else y

    # Widen the narrow HBM inputs to 128 lanes in VMEM (zero fill + offset-0 store).
    xpad_ref[...] = jnp.zeros_like(xpad_ref)
    xpad_ref[:, :DATA_SIZE] = x_ref[...]                    # x   at lanes 0..35
    epad_ref[...] = jnp.zeros_like(epad_ref)
    epad_ref[:, :ENCODED_SIZE] = eps_ref[...]               # eps at lanes 0..7

    # ---- encoder ----
    h = layer(xpad_ref[...], 0, True)
    h = layer(h, 1, True)
    h = layer(h, 2, True)

    # ---- fused fc_mu / fc_var (one dot) ----
    # mv: logvar @ 0..7, mu @ 36..43, logvar @ 44..51, zero elsewhere.
    mv = layer(h, 3, False)
    mv_hi = jnp.where(lane >= MU_OFF, mv, 0.0)              # mu@36..43, logvar@44..51
    lv_lo = jnp.where(lane < ENCODED_SIZE, mv, 0.0)         # logvar@0..7
    std = jnp.exp(0.5 * lv_lo)                              # exp(.5*logvar)@0..7, 1 elsewhere

    # ---- reparameterize (packed): eps*std @ 0..7, mu @ 36..43 ----
    # Decoder block 4 has W_dec0 duplicated at rows 0..7 and 36..43, so its dot
    # computes (eps*std + mu) @ W_dec0 == z @ W_dec0.  logvar @ 44..51 hits zero rows.
    z = epad_ref[...] * std + mv_hi

    # ---- decoder ----
    d = layer(z, 4, True)
    d = layer(d, 5, True)
    d = layer(d, 6, True)
    y = layer(d, 7, False)                                   # recon at lanes 0..35

    # sigmoid on the categorical feature lanes only (mask built from an iota).
    cat = (lane >= CATEGORICAL_GROUPS[0][0]) & (lane <= CATEGORICAL_GROUPS[0][-1])
    for grp in CATEGORICAL_GROUPS[1:]:
        cat = cat | ((lane >= grp[0]) & (lane <= grp[-1]))
    sig = 1.0 / (1.0 + jnp.exp(-y))                          # exact sigmoid (EUP)
    recon = jnp.where(cat, sig, y)

    # Single lane-dense packed output row: [recon | mu | logvar].
    out_ref[...] = recon + mv_hi


# --------------------------------------------------------------------------- wrapper
def vae_forward(x, eps, wslab, scale_slab, shift_slab, *, max_tile_b=1024):
    """Returns [decode(z), input_x, mu, log_var] like the torch module."""
    x_in = x
    b = x.shape[0]
    tb = min(max_tile_b, _round_up(b, 8))
    b_pad = _round_up(b, tb)
    if b_pad != b:                       # zero-pad only the ragged batch tail
        x = jnp.pad(x, ((0, b_pad - b), (0, 0)))
        eps = jnp.pad(eps, ((0, b_pad - b), (0, 0)))

    grid = (b_pad // tb,)
    cost = pl.CostEstimate(
        flops=2 * b_pad * N_BLOCKS * LANE * LANE,
        transcendentals=2 * b_pad * LANE,
        bytes_accessed=4 * (b_pad * (DATA_SIZE + ENCODED_SIZE + LANE)
                            + wslab.size + scale_slab.size + shift_slab.size),
    )

    out = pl.pallas_call(
        _vae_kernel,
        out_shape=jax.ShapeDtypeStruct((b_pad, LANE), jnp.float32),
        grid_spec=pltpu.PrefetchScalarGridSpec(
            num_scalar_prefetch=0,
            grid=grid,
            in_specs=[
                pl.BlockSpec((tb, DATA_SIZE), lambda i: (i, 0)),      # narrow x tile
                pl.BlockSpec((tb, ENCODED_SIZE), lambda i: (i, 0)),   # narrow eps tile
                pl.BlockSpec(wslab.shape, lambda i: (0, 0)),          # resident weights
                pl.BlockSpec(scale_slab.shape, lambda i: (0, 0)),     # resident scales
                pl.BlockSpec(shift_slab.shape, lambda i: (0, 0)),     # resident shifts
            ],
            out_specs=pl.BlockSpec((tb, LANE), lambda i: (i, 0)),
            scratch_shapes=[pltpu.VMEM((tb, LANE), jnp.float32),      # widened x
                            pltpu.VMEM((tb, LANE), jnp.float32)],     # widened eps
        ),
        compiler_params=pltpu.CompilerParams(
            dimension_semantics=("parallel",),
            vmem_limit_bytes=32 * 1024 * 1024,
        ),
        cost_estimate=cost,
    )(x, eps, wslab, scale_slab, shift_slab)

    recon = out[:b, :DATA_SIZE]
    mu = out[:b, MU_OFF:MU_OFF + ENCODED_SIZE]
    logvar = out[:b, LV_OFF:LV_OFF + ENCODED_SIZE]
    return [recon, x_in, mu, logvar]


# --------------------------------------------------------------- synthetic parameters
def make_params(key):
    """Deterministic synthetic raw parameters matching the torch module layout."""
    keys = jax.random.split(key, 9)

    def linear(k, fi, fo):
        kw, kb = jax.random.split(k)
        bound = 1.0 / float(fi) ** 0.5
        return dict(w=jax.random.uniform(kw, (fi, fo), jnp.float32, -bound, bound),
                    b=jax.random.uniform(kb, (fo,), jnp.float32, -bound, bound))

    def bn(k, fo):
        kg, kbe, km, kv = jax.random.split(k, 4)
        return dict(gamma=1.0 + 0.1 * jax.random.normal(kg, (fo,), jnp.float32),
                    beta=0.1 * jax.random.normal(kbe, (fo,), jnp.float32),
                    rmean=0.1 * jax.random.normal(km, (fo,), jnp.float32),
                    rvar=jnp.abs(1.0 + 0.1 * jax.random.normal(kv, (fo,), jnp.float32)))

    def lin_bn(k, fi, fo):
        kl, kn = jax.random.split(k)
        return dict(**linear(kl, fi, fo), **bn(kn, fo))

    return dict(
        encoder=[lin_bn(keys[0], DATA_SIZE, HIDDEN_DIMS[0]),
                 lin_bn(keys[1], HIDDEN_DIMS[0], HIDDEN_DIMS[1]),
                 lin_bn(keys[2], HIDDEN_DIMS[1], HIDDEN_DIMS[2])],
        fc_mu=linear(keys[3], HIDDEN_DIMS[2], ENCODED_SIZE),
        fc_var=linear(keys[4], HIDDEN_DIMS[2], ENCODED_SIZE),
        decoder=[lin_bn(keys[5], ENCODED_SIZE, HIDDEN_DIMS[2]),
                 lin_bn(keys[6], HIDDEN_DIMS[2], HIDDEN_DIMS[1]),
                 lin_bn(keys[7], HIDDEN_DIMS[1], HIDDEN_DIMS[0])],
        final=linear(keys[8], HIDDEN_DIMS[0], DATA_SIZE))


def pack_params(p):
    """Pack raw params into 3 VMEM-resident slabs (BN + bias folded into scale/shift)."""
    wslab = jnp.zeros((N_BLOCKS * LANE, LANE), jnp.float32)
    scale_slab = jnp.zeros((N_BLOCKS, LANE), jnp.float32)
    shift_slab = jnp.zeros((N_BLOCKS, LANE), jnp.float32)

    def fold(q):  # (x@W + b) -> BN(eval) == (x@W)*s + (b*s + beta - rmean*s)
        s = q["gamma"] / jnp.sqrt(q["rvar"] + BN_EPS)
        return s, q["b"] * s + q["beta"] - q["rmean"] * s

    def put(block, w, s, t, row_off=0):
        nonlocal wslab, scale_slab, shift_slab
        fi, fo = w.shape
        r0 = block * LANE + row_off
        wslab = wslab.at[r0:r0 + fi, :fo].set(w)
        scale_slab = scale_slab.at[block, :fo].set(s)
        shift_slab = shift_slab.at[block, :fo].set(t)

    # blocks 0..2 : encoder Linear+BN+ReLU
    for i, q in enumerate(p["encoder"]):
        s, t = fold(q)
        put(i, q["w"], s, t)

    # block 3 : fused fc_mu / fc_var  (logvar @ 0..7, mu @ 36..43, logvar @ 44..51)
    fi = HIDDEN_DIMS[2]
    r0 = 3 * LANE
    wslab = wslab.at[r0:r0 + fi, 0:ENCODED_SIZE].set(p["fc_var"]["w"])
    wslab = wslab.at[r0:r0 + fi, MU_OFF:MU_OFF + ENCODED_SIZE].set(p["fc_mu"]["w"])
    wslab = wslab.at[r0:r0 + fi, LV_OFF:LV_OFF + ENCODED_SIZE].set(p["fc_var"]["w"])
    scale_slab = scale_slab.at[3, 0:ENCODED_SIZE].set(1.0)
    scale_slab = scale_slab.at[3, MU_OFF:LV_OFF + ENCODED_SIZE].set(1.0)
    shift_slab = shift_slab.at[3, 0:ENCODED_SIZE].set(p["fc_var"]["b"])
    shift_slab = shift_slab.at[3, MU_OFF:MU_OFF + ENCODED_SIZE].set(p["fc_mu"]["b"])
    shift_slab = shift_slab.at[3, LV_OFF:LV_OFF + ENCODED_SIZE].set(p["fc_var"]["b"])

    # block 4 : decoder[0]; weight rows duplicated at 0..7 (eps*std) and 36..43 (mu)
    q = p["decoder"][0]
    s, t = fold(q)
    put(4, q["w"], s, t)                                  # rows 0..7
    r0 = 4 * LANE
    wslab = wslab.at[r0 + MU_OFF:r0 + MU_OFF + ENCODED_SIZE,
                     :HIDDEN_DIMS[2]].set(q["w"])         # rows 36..43 (same W)

    # blocks 5,6 : decoder[1], decoder[2]
    for i, q in enumerate(p["decoder"][1:], start=5):
        s, t = fold(q)
        put(i, q["w"], s, t)

    # block 7 : final Linear (no BN / no ReLU)
    q = p["final"]
    put(7, q["w"], jnp.ones((DATA_SIZE,), jnp.float32), q["b"])

    return wslab, scale_slab, shift_slab


# --------------------------------------------------------------------- pure-JAX ref
def vae_reference(x, eps, p):
    def lin(h, q):
        return h @ q["w"] + q["b"]

    def block(h, q):  # Linear -> BatchNorm(eval) -> Dropout(identity) -> ReLU
        y = lin(h, q)
        y = (y - q["rmean"]) / jnp.sqrt(q["rvar"] + BN_EPS) * q["gamma"] + q["beta"]
        return jnp.maximum(y, 0.0)

    h = x
    for q in p["encoder"]:
        h = block(h, q)
    mu = lin(h, p["fc_mu"])
    logvar = lin(h, p["fc_var"])
    z = eps * jnp.exp(0.5 * logvar) + mu
    d = z
    for q in p["decoder"]:
        d = block(d, q)
    y = lin(d, p["final"])
    for grp in CATEGORICAL_GROUPS:
        s, e = grp[0], grp[-1] + 1
        y = y.at[:, s:e].set(1.0 / (1.0 + jnp.exp(-y[:, s:e])))
    return y, mu, logvar


if __name__ == "__main__":
    key = jax.random.PRNGKey(0)
    kx, keps, kp = jax.random.split(key, 3)

    batch = 8
    x = jax.random.normal(kx, (batch, DATA_SIZE), jnp.float32)
    eps = jax.random.normal(keps, (batch, ENCODED_SIZE), jnp.float32)  # randn_like(std)

    params = make_params(kp)
    wslab, scale_slab, shift_slab = pack_params(params)

    fwd = jax.jit(vae_forward)
    recon, x_in, mu, logvar = fwd(x, eps, wslab, scale_slab, shift_slab)
    jax.block_until_ready((recon, x_in, mu, logvar))

    assert recon.shape == (batch, DATA_SIZE)
    assert x_in.shape == (batch, DATA_SIZE)
    assert mu.shape == (batch, ENCODED_SIZE) and logvar.shape == (batch, ENCODED_SIZE)

    ref_recon, ref_mu, ref_lv = vae_reference(x, eps, params)
    for name, got, want in [("recon", recon, ref_recon),
                            ("mu", mu, ref_mu),
                            ("logvar", logvar, ref_lv)]:
        err = float(jnp.max(jnp.abs(got - want)))
        assert err < 1e-2, f"{name} mismatch vs reference: max abs err {err}"

    print("KERNEL_OK")
</pallas_src>

<mosaic_0001>
module attributes {stable_mosaic.version = 11 : i64} {
  func.func @_vae_kernel(%arg0: i32, %arg1: memref<8x36xf32, #tpu.memory_space<vmem>>, %arg2: memref<8x8xf32, #tpu.memory_space<vmem>>, %arg3: memref<1024x128xf32, #tpu.memory_space<vmem>>, %arg4: memref<8x128xf32, #tpu.memory_space<vmem>>, %arg5: memref<8x128xf32, #tpu.memory_space<vmem>>, %arg6: memref<8x128xf32, #tpu.memory_space<vmem>>, %arg7: memref<8x128xf32, #tpu.memory_space<vmem>>, %arg8: memref<8x128xf32, #tpu.memory_space<vmem>>) attributes {dimension_semantics = [#tpu.dimension_semantics<parallel>], iteration_bounds = array<i64: 1>, scalar_prefetch = 0 : i64, scratch_operands = 2 : i64, tpu.core_type = #tpu.core_type<tc>, window_params = [{transform_indices = @transform_0, window_bounds = array<i64: 8, 36>}, {transform_indices = @transform_1, window_bounds = array<i64: 8, 8>}, {pipeline_mode = #tpu.pipeline_mode<synchronous>, transform_indices = @transform_2, window_bounds = array<i64: 1024, 128>}, {pipeline_mode = #tpu.pipeline_mode<synchronous>, transform_indices = @transform_3, window_bounds = array<i64: 8, 128>}, {pipeline_mode = #tpu.pipeline_mode<synchronous>, transform_indices = @transform_4, window_bounds = array<i64: 8, 128>}, {transform_indices = @transform_5, window_bounds = array<i64: 8, 128>}]} {
    %0 = tpu.iota {dimensions = array<i32: 1>} : vector<8x128xi32>
    %cst = arith.constant 0.000000e+00 : f32
    %1 = vector.broadcast %cst : f32 to vector<8x128xf32>
    %c0 = arith.constant 0 : index
    %c0_0 = arith.constant 0 : index
    %2 = vector.load %arg7[%c0, %c0_0] : memref<8x128xf32, #tpu.memory_space<vmem>>, vector<8x128xf32>
    tpu.vector_store %arg7[%c0, %c0_0], %1 {strides = array<i32>} : memref<8x128xf32, #tpu.memory_space<vmem>>, vector<8x128xf32>,
    %c0_1 = arith.constant 0 : index
    %c0_2 = arith.constant 0 : index
    %3 = vector.load %arg1[%c0_1, %c0_2] : memref<8x36xf32, #tpu.memory_space<vmem>>, vector<8x36xf32>
    %c0_3 = arith.constant 0 : index
    %c0_4 = arith.constant 0 : index
    %4 = vector.load %arg7[%c0_3, %c0_4] : memref<8x128xf32, #tpu.memory_space<vmem>>, vector<8x36xf32>
    tpu.vector_store %arg7[%c0_3, %c0_4], %3 {strides = array<i32>} : memref<8x128xf32, #tpu.memory_space<vmem>>, vector<8x36xf32>,
    %cst_5 = arith.constant 0.000000e+00 : f32
    %5 = vector.broadcast %cst_5 : f32 to vector<8x128xf32>
    %c0_6 = arith.constant 0 : index
    %c0_7 = arith.constant 0 : index
    %6 = vector.load %arg8[%c0_6, %c0_7] : memref<8x128xf32, #tpu.memory_space<vmem>>, vector<8x128xf32>
    tpu.vector_store %arg8[%c0_6, %c0_7], %5 {strides = array<i32>} : memref<8x128xf32, #tpu.memory_space<vmem>>, vector<8x128xf32>,
    %c0_8 = arith.constant 0 : index
    %c0_9 = arith.constant 0 : index
    %7 = vector.load %arg2[%c0_8, %c0_9] : memref<8x8xf32, #tpu.memory_space<vmem>>, vector<8x8xf32>
    %c0_10 = arith.constant 0 : index
    %c0_11 = arith.constant 0 : index
    %8 = vector.load %arg8[%c0_10, %c0_11] : memref<8x128xf32, #tpu.memory_space<vmem>>, vector<8x8xf32>
    tpu.vector_store %arg8[%c0_10, %c0_11], %7 {strides = array<i32>} : memref<8x128xf32, #tpu.memory_space<vmem>>, vector<8x8xf32>,
    %c0_12 = arith.constant 0 : index
    %c0_13 = arith.constant 0 : index
    %9 = vector.load %arg7[%c0_12, %c0_13] : memref<8x128xf32, #tpu.memory_space<vmem>>, vector<8x128xf32>
    %c0_14 = arith.constant 0 : index
    %c0_15 = arith.constant 0 : index
    %10 = vector.load %arg3[%c0_14, %c0_15] : memref<1024x128xf32, #tpu.memory_space<vmem>>, vector<128x128xf32>
    %cst_16 = arith.constant dense<0.000000e+00> : vector<8x128xf32>
    %11 = tpu.matmul %9, %10, %cst_16 {dimension_numbers = #tpu.dot_dimension_numbers<[1], [0], [0], [1], [0, 0, 1, 1], [], []>} : vector<8x128xf32>, vector<128x128xf32>, vector<8x128xf32> -> vector<8x128xf32>
    %c0_17 = arith.constant 0 : index
    %c0_18 = arith.constant 0 : index
    %12 = vector.load %arg4[%c0_17, %c0_18] : memref<8x128xf32, #tpu.memory_space<vmem>>, vector<1x128xf32>
    %13 = vector.broadcast %12 : vector<1x128xf32> to vector<8x128xf32>
    %14 = arith.mulf %11, %13 : vector<8x128xf32>
    %c0_19 = arith.constant 0 : index
    %c0_20 = arith.constant 0 : index
    %15 = vector.load %arg5[%c0_19, %c0_20] : memref<8x128xf32, #tpu.memory_space<vmem>>, vector<1x128xf32>
    %16 = vector.broadcast %15 : vector<1x128xf32> to vector<8x128xf32>
    %17 = arith.addf %14, %16 : vector<8x128xf32>
    %cst_21 = arith.constant 0.000000e+00 : f32
    %18 = vector.broadcast %cst_21 : f32 to vector<8x128xf32>
    %19 = arith.maximumf %17, %18 : vector<8x128xf32>
    %c128 = arith.constant 128 : index
    %c0_22 = arith.constant 0 : index
    %20 = vector.load %arg3[%c128, %c0_22] : memref<1024x128xf32, #tpu.memory_space<vmem>>, vector<128x128xf32>
    %cst_23 = arith.constant dense<0.000000e+00> : vector<8x128xf32>
    %21 = tpu.matmul %19, %20, %cst_23 {dimension_numbers = #tpu.dot_dimension_numbers<[1], [0], [0], [1], [0, 0, 1, 1], [], []>} : vector<8x128xf32>, vector<128x128xf32>, vector<8x128xf32> -> vector<8x128xf32>
    %c1 = arith.constant 1 : index
    %c0_24 = arith.constant 0 : index
    %22 = vector.load %arg4[%c1, %c0_24] : memref<8x128xf32, #tpu.memory_space<vmem>>, vector<1x128xf32>
    %23 = vector.broadcast %22 : vector<1x128xf32> to vector<8x128xf32>
    %24 = arith.mulf %21, %23 : vector<8x128xf32>
    %c1_25 = arith.constant 1 : index
    %c0_26 = arith.constant 0 : index
    %25 = vector.load %arg5[%c1_25, %c0_26] : memref<8x128xf32, #tpu.memory_space<vmem>>, vector<1x128xf32>
    %26 = vector.broadcast %25 : vector<1x128xf32> to vector<8x128xf32>
    %27 = arith.addf %24, %26 : vector<8x128xf32>
    %cst_27 = arith.constant 0.000000e+00 : f32
    %28 = vector.broadcast %cst_27 : f32 to vector<8x128xf32>
    %29 = arith.maximumf %27, %28 : vector<8x128xf32>
    %c256 = arith.constant 256 : index
    %c0_28 = arith.constant 0 : index
    %30 = vector.load %arg3[%c256, %c0_28] : memref<1024x128xf32, #tpu.memory_space<vmem>>, vector<128x128xf32>
    %cst_29 = arith.constant dense<0.000000e+00> : vector<8x128xf32>
    %31 = tpu.matmul %29, %30, %cst_29 {dimension_numbers = #tpu.dot_dimension_numbers<[1], [0], [0], [1], [0, 0, 1, 1], [], []>} : vector<8x128xf32>, vector<128x128xf32>, vector<8x128xf32> -> vector<8x128xf32>
    %c2 = arith.constant 2 : index
    %c0_30 = arith.constant 0 : index
    %32 = vector.load %arg4[%c2, %c0_30] : memref<8x128xf32, #tpu.memory_space<vmem>>, vector<1x128xf32>
    %33 = vector.broadcast %32 : vector<1x128xf32> to vector<8x128xf32>
    %34 = arith.mulf %31, %33 : vector<8x128xf32>
    %c2_31 = arith.constant 2 : index
    %c0_32 = arith.constant 0 : index
    %35 = vector.load %arg5[%c2_31, %c0_32] : memref<8x128xf32, #tpu.memory_space<vmem>>, vector<1x128xf32>
    %36 = vector.broadcast %35 : vector<1x128xf32> to vector<8x128xf32>
    %37 = arith.addf %34, %36 : vector<8x128xf32>
    %cst_33 = arith.constant 0.000000e+00 : f32
    %38 = vector.broadcast %cst_33 : f32 to vector<8x128xf32>
    %39 = arith.maximumf %37, %38 : vector<8x128xf32>
    %c384 = arith.constant 384 : index
    %c0_34 = arith.constant 0 : index
    %40 = vector.load %arg3[%c384, %c0_34] : memref<1024x128xf32, #tpu.memory_space<vmem>>, vector<128x128xf32>
    %cst_35 = arith.constant dense<0.000000e+00> : vector<8x128xf32>
    %41 = tpu.matmul %39, %40, %cst_35 {dimension_numbers = #tpu.dot_dimension_numbers<[1], [0], [0], [1], [0, 0, 1, 1], [], []>} : vector<8x128xf32>, vector<128x128xf32>, vector<8x128xf32> -> vector<8x128xf32>
    %c3 = arith.constant 3 : index
    %c0_36 = arith.constant 0 : index
    %42 = vector.load %arg4[%c3, %c0_36] : memref<8x128xf32, #tpu.memory_space<vmem>>, vector<1x128xf32>
    %43 = vector.broadcast %42 : vector<1x128xf32> to vector<8x128xf32>
    %44 = arith.mulf %41, %43 : vector<8x128xf32>
    %c3_37 = arith.constant 3 : index
    %c0_38 = arith.constant 0 : index
    %45 = vector.load %arg5[%c3_37, %c0_38] : memref<8x128xf32, #tpu.memory_space<vmem>>, vector<1x128xf32>
    %46 = vector.broadcast %45 : vector<1x128xf32> to vector<8x128xf32>
    %47 = arith.addf %44, %46 : vector<8x128xf32>
    %c36_i32 = arith.constant 36 : i32
    %48 = vector.broadcast %c36_i32 : i32 to vector<8x128xi32>
    %49 = arith.cmpi sge, %0, %48 : vector<8x128xi32>
    %cst_39 = arith.constant 0.000000e+00 : f32
    %50 = vector.broadcast %cst_39 : f32 to vector<8x128xf32>
    %51 = arith.select %49, %47, %50 : vector<8x128xi1>, vector<8x128xf32>
    %c8_i32 = arith.constant 8 : i32
    %52 = vector.broadcast %c8_i32 : i32 to vector<8x128xi32>
    %53 = arith.cmpi slt, %0, %52 : vector<8x128xi32>
    %cst_40 = arith.constant 0.000000e+00 : f32
    %54 = vector.broadcast %cst_40 : f32 to vector<8x128xf32>
    %55 = arith.select %53, %47, %54 : vector<8x128xi1>, vector<8x128xf32>
    %cst_41 = arith.constant 5.000000e-01 : f32
    %56 = vector.broadcast %cst_41 : f32 to vector<8x128xf32>
    %57 = arith.mulf %56, %55 : vector<8x128xf32>
    %58 = math.exp %57 : vector<8x128xf32>
    %c0_42 = arith.constant 0 : index
    %c0_43 = arith.constant 0 : index
    %59 = vector.load %arg8[%c0_42, %c0_43] : memref<8x128xf32, #tpu.memory_space<vmem>>, vector<8x128xf32>
    %60 = arith.mulf %59, %58 : vector<8x128xf32>
    %61 = arith.addf %60, %51 : vector<8x128xf32>
    %c512 = arith.constant 512 : index
    %c0_44 = arith.constant 0 : index
    %62 = vector.load %arg3[%c512, %c0_44] : memref<1024x128xf32, #tpu.memory_space<vmem>>, vector<128x128xf32>
    %cst_45 = arith.constant dense<0.000000e+00> : vector<8x128xf32>
    %63 = tpu.matmul %61, %62, %cst_45 {dimension_numbers = #tpu.dot_dimension_numbers<[1], [0], [0], [1], [0, 0, 1, 1], [], []>} : vector<8x128xf32>, vector<128x128xf32>, vector<8x128xf32> -> vector<8x128xf32>
    %c4 = arith.constant 4 : index
    %c0_46 = arith.constant 0 : index
    %64 = vector.load %arg4[%c4, %c0_46] : memref<8x128xf32, #tpu.memory_space<vmem>>, vector<1x128xf32>
    %65 = vector.broadcast %64 : vector<1x128xf32> to vector<8x128xf32>
    %66 = arith.mulf %63, %65 : vector<8x128xf32>
    %c4_47 = arith.constant 4 : index
    %c0_48 = arith.constant 0 : index
    %67 = vector.load %arg5[%c4_47, %c0_48] : memref<8x128xf32, #tpu.memory_space<vmem>>, vector<1x128xf32>
    %68 = vector.broadcast %67 : vector<1x128xf32> to vector<8x128xf32>
    %69 = arith.addf %66, %68 : vector<8x128xf32>
    %cst_49 = arith.constant 0.000000e+00 : f32
    %70 = vector.broadcast %cst_49 : f32 to vector<8x128xf32>
    %71 = arith.maximumf %69, %70 : vector<8x128xf32>
    %c640 = arith.constant 640 : index
    %c0_50 = arith.constant 0 : index
    %72 = vector.load %arg3[%c640, %c0_50] : memref<1024x128xf32, #tpu.memory_space<vmem>>, vector<128x128xf32>
    %cst_51 = arith.constant dense<0.000000e+00> : vector<8x128xf32>
    %73 = tpu.matmul %71, %72, %cst_51 {dimension_numbers = #tpu.dot_dimension_numbers<[1], [0], [0], [1], [0, 0, 1, 1], [], []>} : vector<8x128xf32>, vector<128x128xf32>, vector<8x128xf32> -> vector<8x128xf32>
    %c5 = arith.constant 5 : index
    %c0_52 = arith.constant 0 : index
    %74 = vector.load %arg4[%c5, %c0_52] : memref<8x128xf32, #tpu.memory_space<vmem>>, vector<1x128xf32>
    %75 = vector.broadcast %74 : vector<1x128xf32> to vector<8x128xf32>
    %76 = arith.mulf %73, %75 : vector<8x128xf32>
    %c5_53 = arith.constant 5 : index
    %c0_54 = arith.constant 0 : index
    %77 = vector.load %arg5[%c5_53, %c0_54] : memref<8x128xf32, #tpu.memory_space<vmem>>, vector<1x128xf32>
    %78 = vector.broadcast %77 : vector<1x128xf32> to vector<8x128xf32>
    %79 = arith.addf %76, %78 : vector<8x128xf32>
    %cst_55 = arith.constant 0.000000e+00 : f32
    %80 = vector.broadcast %cst_55 : f32 to vector<8x128xf32>
    %81 = arith.maximumf %79, %80 : vector<8x128xf32>
    %c768 = arith.constant 768 : index
    %c0_56 = arith.constant 0 : index
    %82 = vector.load %arg3[%c768, %c0_56] : memref<1024x128xf32, #tpu.memory_space<vmem>>, vector<128x128xf32>
    %cst_57 = arith.constant dense<0.000000e+00> : vector<8x128xf32>
    %83 = tpu.matmul %81, %82, %cst_57 {dimension_numbers = #tpu.dot_dimension_numbers<[1], [0], [0], [1], [0, 0, 1, 1], [], []>} : vector<8x128xf32>, vector<128x128xf32>, vector<8x128xf32> -> vector<8x128xf32>
    %c6 = arith.constant 6 : index
    %c0_58 = arith.constant 0 : index
    %84 = vector.load %arg4[%c6, %c0_58] : memref<8x128xf32, #tpu.memory_space<vmem>>, vector<1x128xf32>
    %85 = vector.broadcast %84 : vector<1x128xf32> to vector<8x128xf32>
    %86 = arith.mulf %83, %85 : vector<8x128xf32>
    %c6_59 = arith.constant 6 : index
    %c0_60 = arith.constant 0 : index
    %87 = vector.load %arg5[%c6_59, %c0_60] : memref<8x128xf32, #tpu.memory_space<vmem>>, vector<1x128xf32>
    %88 = vector.broadcast %87 : vector<1x128xf32> to vector<8x128xf32>
    %89 = arith.addf %86, %88 : vector<8x128xf32>
    %cst_61 = arith.constant 0.000000e+00 : f32
    %90 = vector.broadcast %cst_61 : f32 to vector<8x128xf32>
    %91 = arith.maximumf %89, %90 : vector<8x128xf32>
    %c896 = arith.constant 896 : index
    %c0_62 = arith.constant 0 : index
    %92 = vector.load %arg3[%c896, %c0_62] : memref<1024x128xf32, #tpu.memory_space<vmem>>, vector<128x128xf32>
    %cst_63 = arith.constant dense<0.000000e+00> : vector<8x128xf32>
    %93 = tpu.matmul %91, %92, %cst_63 {dimension_numbers = #tpu.dot_dimension_numbers<[1], [0], [0], [1], [0, 0, 1, 1], [], []>} : vector<8x128xf32>, vector<128x128xf32>, vector<8x128xf32> -> vector<8x128xf32>
    %c7 = arith.constant 7 : index
    %c0_64 = arith.constant 0 : index
    %94 = vector.load %arg4[%c7, %c0_64] : memref<8x128xf32, #tpu.memory_space<vmem>>, vector<1x128xf32>
    %95 = vector.broadcast %94 : vector<1x128xf32> to vector<8x128xf32>
    %96 = arith.mulf %93, %95 : vector<8x128xf32>
    %c7_65 = arith.constant 7 : index
    %c0_66 = arith.constant 0 : index
    %97 = vector.load %arg5[%c7_65, %c0_66] : memref<8x128xf32, #tpu.memory_space<vmem>>, vector<1x128xf32>
    %98 = vector.broadcast %97 : vector<1x128xf32> to vector<8x128xf32>
    %99 = arith.addf %96, %98 : vector<8x128xf32>
    %c20_i32 = arith.constant 20 : i32
    %100 = vector.broadcast %c20_i32 : i32 to vector<8x128xi32>
    %101 = arith.cmpi sge, %0, %100 : vector<8x128xi32>
    %c23_i32 = arith.constant 23 : i32
    %102 = vector.broadcast %c23_i32 : i32 to vector<8x128xi32>
    %103 = arith.cmpi sle, %0, %102 : vector<8x128xi32>
    %104 = arith.andi %101, %103 : vector<8x128xi1>
    %c24_i32 = arith.constant 24 : i32
    %105 = vector.broadcast %c24_i32 : i32 to vector<8x128xi32>
    %106 = arith.cmpi sge, %0, %105 : vector<8x128xi32>
    %c28_i32 = arith.constant 28 : i32
    %107 = vector.broadcast %c28_i32 : i32 to vector<8x128xi32>
    %108 = arith.cmpi sle, %0, %107 : vector<8x128xi32>
    %109 = arith.andi %106, %108 : vector<8x128xi1>
    %110 = arith.ori %104, %109 : vector<8x128xi1>
    %c29_i32 = arith.constant 29 : i32
    %111 = vector.broadcast %c29_i32 : i32 to vector<8x128xi32>
    %112 = arith.cmpi sge, %0, %111 : vector<8x128xi32>
    %c35_i32 = arith.constant 35 : i32
    %113 = vector.broadcast %c35_i32 : i32 to vector<8x128xi32>
    %114 = arith.cmpi sle, %0, %113 : vector<8x128xi32>
    %115 = arith.andi %112, %114 : vector<8x128xi1>
    %116 = arith.ori %110, %115 : vector<8x128xi1>
    %cst_67 = arith.constant 0.000000e+00 : f32
    %117 = vector.broadcast %cst_67 : f32 to vector<8x128xf32>
    %118 = arith.subf %117, %99 : vector<8x128xf32>
    %119 = math.exp %118 : vector<8x128xf32>
    %cst_68 = arith.constant 1.000000e+00 : f32
    %120 = vector.broadcast %cst_68 : f32 to vector<8x128xf32>
    %121 = arith.addf %120, %119 : vector<8x128xf32>
    %cst_69 = arith.constant 1.000000e+00 : f32
    %122 = vector.broadcast %cst_69 : f32 to vector<8x128xf32>
    %123 = arith.divf %122, %121 : vector<8x128xf32>
    %124 = arith.select %116, %123, %99 : vector<8x128xi1>, vector<8x128xf32>
    %125 = arith.addf %124, %51 : vector<8x128xf32>
    %c0_70 = arith.constant 0 : index
    %c0_71 = arith.constant 0 : index
    %126 = vector.load %arg6[%c0_70, %c0_71] : memref<8x128xf32, #tpu.memory_space<vmem>>, vector<8x128xf32>
    tpu.vector_store %arg6[%c0_70, %c0_71], %125 {strides = array<i32>} : memref<8x128xf32, #tpu.memory_space<vmem>>, vector<8x128xf32>,
    return
  }
  func.func @transform_0(%arg0: i32) -> (i32, i32) {
    %c0_i32 = arith.constant 0 : i32
    %c0_i32_0 = arith.constant 0 : i32
    return %arg0, %c0_i32 : i32, i32
  }
  func.func @transform_1(%arg0: i32) -> (i32, i32) {
    %c0_i32 = arith.constant 0 : i32
    %c0_i32_0 = arith.constant 0 : i32
    return %arg0, %c0_i32 : i32, i32
  }
  func.func @transform_2(%arg0: i32) -> (i32, i32) {
    %c0_i32 = arith.constant 0 : i32
    %c0_i32_0 = arith.constant 0 : i32
    %c0_i32_1 = arith.constant 0 : i32
    return %c0_i32, %c0_i32_0 : i32, i32
  }
  func.func @transform_3(%arg0: i32) -> (i32, i32) {
    %c0_i32 = arith.constant 0 : i32
    %c0_i32_0 = arith.constant 0 : i32
    %c0_i32_1 = arith.constant 0 : i32
    return %c0_i32, %c0_i32_0 : i32, i32
  }
  func.func @transform_4(%arg0: i32) -> (i32, i32) {
    %c0_i32 = arith.constant 0 : i32
    %c0_i32_0 = arith.constant 0 : i32
    %c0_i32_1 = arith.constant 0 : i32
    return %c0_i32, %c0_i32_0 : i32, i32
  }
  func.func @transform_5(%arg0: i32) -> (i32, i32) {
    %c0_i32 = arith.constant 0 : i32
    %c0_i32_0 = arith.constant 0 : i32
    return %arg0, %c0_i32 : i32, i32
  }
}

</mosaic_0001>

<llo_original>
// kernel: vae_forward.1
$region0: #{vae_forward.1}
  #allocation0 [shape = 'u32[]', space=smem, size = 0x4, offset = 0x4, fixed_abs, tag = 'smem constant byte address 0x4 - core index']
  #allocation1 [shape = 'u32[144,128]{1,0:T(1,128)}', space=vmem, size = 0x12000, scoped, tag = 'internal scratch']
  #allocation2 [shape = 'f32[8,128]{1,0:T(8,128)}', space=vmem, size = 0x1000, scoped, tag = 'scratch operand']
  #allocation3 [shape = 'f32[8,128]{1,0:T(8,128)}', space=vmem, size = 0x1000, scoped, tag = 'scratch operand']
  %s0 = inlined_call_operand.hbm [shape: f32[8,36], index: 0, kind: input, shape index: {}]
  %s1 = inlined_call_operand.hbm [shape: f32[8,8], index: 1, kind: input, shape index: {}]
  %s2 = inlined_call_operand.hbm [shape: f32[1024,128], index: 2, kind: input, shape index: {}]
  %s3 = inlined_call_operand.hbm [shape: f32[8,128], index: 3, kind: input, shape index: {}]
  %s4 = inlined_call_operand.hbm [shape: f32[8,128], index: 4, kind: input, shape index: {}]
  %s5 = inlined_call_operand.vmem [shape: f32[8,128], index: 5, kind: output, shape index: {}]
  %s6 = sld [smem:[#allocation0]]
  $region50: #{vae_forward.1} parent=0
    _
  %s8 = ssub.s32 1, %s6
  %s9 = scalar_select 0, %s8, %s6
  $region1: #{vae_forward.1} parent=0
    #allocation4 [shape = 'u8[4096]{0}', space=vmem, size = 0x1000, scoped, tag = 'input window, operand 0, single buffered']
    #allocation5 [shape = 's32[1]{0}', space=sflag, size = 0x4, scoped, tag = 'scoped memory for vae_forward.1']
    #allocation6 [shape = 'u8[4096]{0}', space=vmem, size = 0x1000, scoped, tag = 'input window, operand 1, single buffered']
    #allocation7 [shape = 's32[1]{0}', space=sflag, size = 0x4, scoped, tag = 'scoped memory for vae_forward.1']
    #allocation8 [shape = 'u8[524288]{0}', space=vmem, size = 0x80000, scoped, tag = 'input window, operand 2, single buffered']
    #allocation9 [shape = 'u8[4096]{0}', space=vmem, size = 0x1000, scoped, tag = 'input window, operand 3, single buffered']
    #allocation10 [shape = 's32[1]{0}', space=sflag, size = 0x4, scoped, tag = 'scoped memory for vae_forward.1']
    #allocation11 [shape = 'u8[4096]{0}', space=vmem, size = 0x1000, scoped, tag = 'input window, operand 4, single buffered']
    %10 = vsyncpa [#allocation5], 0
    %11 = vsyncpa [#allocation7], 0
    %12 = vsyncpa [#allocation10], 0
    // Predicated region
    $region2: #{vae_forward.1} parent=1 // pred_check
      _
    $region3: #{vae_forward.1} parent=1 // pred_check_branch
      %14 = sbr.rel (0) target = $region5
    $region4: #{vae_forward.1} parent=1 // pred_region
      %s16 = ssub.s32 128, 128
      %17 = vsyncadd [#allocation5], %s16
      %s19 = sshll.u32 [#allocation4], 4
      %s20 = int_to_ptr.vmem [resolvable:$true] %s19
      %22 = dma.hbm_to_vmem [thread:$0]  %s0, 128, %s20, [#allocation5]
    $region5: #{vae_forward.1} parent=1 // pred_fallthru
      _
    // Predicated region
    $region6: #{vae_forward.1} parent=1 // pred_check
      _
    $region7: #{vae_forward.1} parent=1 // pred_check_branch
      %24 = sbr.rel (0) target = $region9
    $region8: #{vae_forward.1} parent=1 // pred_region
      %s26 = ssub.s32 128, 128
      %27 = vsyncadd [#allocation7], %s26
      %s29 = sshll.u32 [#allocation6], 4
      %s30 = int_to_ptr.vmem [resolvable:$true] %s29
      %32 = dma.hbm_to_vmem [thread:$0]  %s1, 128, %s30, [#allocation7]
    $region9: #{vae_forward.1} parent=1 // pred_fallthru
      _
    // Predicated region
    $region10: #{vae_forward.1} parent=1 // pred_check
      _
    $region11: #{vae_forward.1} parent=1 // pred_check_branch
      %34 = sbr.rel (0) target = $region13
    $region12: #{vae_forward.1} parent=1 // pred_region
      %s36 = ssub.s32 16384, 16384
      %37 = vsyncadd [#allocation7], %s36
      %s38 = sshll.u32 [#allocation8], 4
      %s39 = int_to_ptr.vmem [resolvable:$true] %s38
      %44 = dma.hbm_to_vmem [thread:$0]  %s2, 16384, %s39, [#allocation7], 128, 128, 8
    $region13: #{vae_forward.1} parent=1 // pred_fallthru
      _
    // Predicated region
    $region14: #{vae_forward.1} parent=1 // pred_check
      _
    $region15: #{vae_forward.1} parent=1 // pred_check_branch
      %46 = sbr.rel (0) target = $region17
    $region16: #{vae_forward.1} parent=1 // pred_region
      %s48 = ssub.s32 128, 128
      %49 = vsyncadd [#allocation10], %s48
      %s51 = sshll.u32 [#allocation9], 4
      %s52 = int_to_ptr.vmem [resolvable:$true] %s51
      %54 = dma.hbm_to_vmem [thread:$0]  %s3, 128, %s52, [#allocation10]
    $region17: #{vae_forward.1} parent=1 // pred_fallthru
      _
    // Predicated region
    $region18: #{vae_forward.1} parent=1 // pred_check
      _
    $region19: #{vae_forward.1} parent=1 // pred_check_branch
      %56 = sbr.rel (0) target = $region21
    $region20: #{vae_forward.1} parent=1 // pred_region
      %s58 = ssub.s32 128, 128
      %59 = vsyncadd [#allocation10], %s58
      %s61 = sshll.u32 [#allocation11], 4
      %s62 = int_to_ptr.vmem [resolvable:$true] %s61
      %64 = dma.hbm_to_vmem [thread:$0]  %s4, 128, %s62, [#allocation10]
    $region21: #{vae_forward.1} parent=1 // pred_fallthru
      _
    // Predicated region
    $region22: #{vae_forward.1} parent=1 // pred_check
      _
    $region23: #{vae_forward.1} parent=1 // pred_check_branch
      %66 = sbr.rel (0) target = $region25
    $region24: #{vae_forward.1} parent=1 // pred_region
      %67 = dma.done [#allocation5], 128
    $region25: #{vae_forward.1} parent=1 // pred_fallthru
      _
    // Predicated region
    $region26: #{vae_forward.1} parent=1 // pred_check
      _
    $region27: #{vae_forward.1} parent=1 // pred_check_branch
      %69 = sbr.rel (0) target = $region29
    $region28: #{vae_forward.1} parent=1 // pred_region
      %70 = dma.done [#allocation7], 128
    $region29: #{vae_forward.1} parent=1 // pred_fallthru
      _
    // Predicated region
    $region30: #{vae_forward.1} parent=1 // pred_check
      _
    $region31: #{vae_forward.1} parent=1 // pred_check_branch
      %72 = sbr.rel (0) target = $region33
    $region32: #{vae_forward.1} parent=1 // pred_region
      %73 = dma.done [#allocation7], 16384
    $region33: #{vae_forward.1} parent=1 // pred_fallthru
      _
    // Predicated region
    $region34: #{vae_forward.1} parent=1 // pred_check
      _
    $region35: #{vae_forward.1} parent=1 // pred_check_branch
      %75 = sbr.rel (0) target = $region37
    $region36: #{vae_forward.1} parent=1 // pred_region
      %76 = dma.done [#allocation10], 128
    $region37: #{vae_forward.1} parent=1 // pred_fallthru
      _
    // Predicated region
    $region38: #{vae_forward.1} parent=1 // pred_check
      _
    $region39: #{vae_forward.1} parent=1 // pred_check_branch
      %78 = sbr.rel (0) target = $region41
    $region40: #{vae_forward.1} parent=1 // pred_region
      %79 = dma.done [#allocation10], 128
    $region41: #{vae_forward.1} parent=1 // pred_fallthru
      _
    %v80 = vlaneseq
    %v81 = vand.u32 %v80, 127
    %82 = vst [vmem:[#allocation2] sm:$0xff] 0.0
    %v83 = vld [vmem:[#allocation4] sm:$0xff]
    %vm84 = vcmask 293888
    %85 = vst.msk [vmem:[#allocation2] sm:$0xff] %vm84, %v83
    %86 = vst [vmem:[#allocation3] sm:$0xff] 0.0
    %v87 = vld [vmem:[#allocation6] sm:$0xff]
    %vm88 = vcmask 64512
    %89 = vst.msk [vmem:[#allocation3] sm:$0xff] %vm88, %v87
    %v90 = vld [vmem:[#allocation2] sm:$0xff]
    %v91 = vld [vmem:[#allocation8] sm:$0xff]
    %v92 = vld [vmem:[#allocation8 + $0x8] sm:$0xff]
    %v93 = vld [vmem:[#allocation8 + $0x10] sm:$0xff]
    %v94 = vld [vmem:[#allocation8 + $0x18] sm:$0xff]
    %v95 = vld [vmem:[#allocation8 + $0x20] sm:$0xff]
    %v96 = vld [vmem:[#allocation8 + $0x28] sm:$0xff]
    %v97 = vld [vmem:[#allocation8 + $0x30] sm:$0xff]
    %v98 = vld [vmem:[#allocation8 + $0x38] sm:$0xff]
    %v99 = vld [vmem:[#allocation8 + $0x40] sm:$0xff]
    %v100 = vld [vmem:[#allocation8 + $0x48] sm:$0xff]
    %v101 = vld [vmem:[#allocation8 + $0x50] sm:$0xff]
    %v102 = vld [vmem:[#allocation8 + $0x58] sm:$0xff]
    %v103 = vld [vmem:[#allocation8 + $0x60] sm:$0xff]
    %v104 = vld [vmem:[#allocation8 + $0x68] sm:$0xff]
    %v105 = vld [vmem:[#allocation8 + $0x70] sm:$0xff]
    %v106 = vld [vmem:[#allocation8 + $0x78] sm:$0xff]
    %107 = vmatprep.subr.mxu0 0.0
    %108 = vmatpush1.msra.mxu0 %v106
    %109 = vmatprep.subr.mxu0 0.0
    %110 = vmatpush1.msra.mxu0 %v105
    %111 = vmatprep.subr.mxu0 0.0
    %112 = vmatpush1.msra.mxu0 %v104
    %113 = vmatprep.subr.mxu0 0.0
    %114 = vmatpush1.msra.mxu0 %v103
    %115 = vmatprep.subr.mxu0 0.0
    %116 = vmatpush1.msra.mxu0 %v102
    %117 = vmatprep.subr.mxu0 0.0
    %118 = vmatpush1.msra.mxu0 %v101
    %119 = vmatprep.subr.mxu0 0.0
    %120 = vmatpush1.msra.mxu0 %v100
    %121 = vmatprep.subr.mxu0 0.0
    %122 = vmatpush1.msra.mxu0 %v99
    %123 = vmatprep.subr.mxu0 0.0
    %124 = vmatpush1.msra.mxu0 %v98
    %125 = vmatprep.subr.mxu0 0.0
    %126 = vmatpush1.msra.mxu0 %v97
    %127 = vmatprep.subr.mxu0 0.0
    %128 = vmatpush1.msra.mxu0 %v96
    %129 = vmatprep.subr.mxu0 0.0
    %130 = vmatpush1.msra.mxu0 %v95
    %131 = vmatprep.subr.mxu0 0.0
    %132 = vmatpush1.msra.mxu0 %v94
    %133 = vmatprep.subr.mxu0 0.0
    %134 = vmatpush1.msra.mxu0 %v93
    %135 = vmatprep.subr.mxu0 0.0
    %136 = vmatpush1.msra.mxu0 %v92
    %137 = vmatprep.subr.mxu0 0.0
    %138 = vmatpush1.msra.mxu0 %v91
    %139 = vmatprep.subr.mxu0 0.0
    %140 = vmatpush2.msra.mxu0 0.0
    %141 = vmatprep.subr.mxu0 0.0
    %142 = vmatpush2.msra.mxu0 0.0
    %143 = vmatprep.subr.mxu0 0.0
    %144 = vmatpush2.msra.mxu0 0.0
    %145 = vmatprep.subr.mxu0 0.0
    %146 = vmatpush2.msra.mxu0 0.0
    %147 = vmatprep.subr.mxu0 0.0
    %148 = vmatpush2.msra.mxu0 0.0
    %149 = vmatprep.subr.mxu0 0.0
    %150 = vmatpush2.msra.mxu0 0.0
    %151 = vmatprep.subr.mxu0 0.0
    %152 = vmatpush2.msra.mxu0 0.0
    %153 = vmatprep.subr.mxu0 0.0
    %154 = vmatpush2.msra.mxu0 0.0
    %155 = vmatprep.subr.mxu0 0.0
    %156 = vmatpush2.msra.mxu0 0.0
    %157 = vmatprep.subr.mxu0 0.0
    %158 = vmatpush2.msra.mxu0 0.0
    %159 = vmatprep.subr.mxu0 0.0
    %160 = vmatpush2.msra.mxu0 0.0
    %161 = vmatprep.subr.mxu0 0.0
    %162 = vmatpush2.msra.mxu0 0.0
    %163 = vmatprep.subr.mxu0 0.0
    %164 = vmatpush2.msra.mxu0 0.0
    %165 = vmatprep.subr.mxu0 0.0
    %166 = vmatpush2.msra.mxu0 0.0
    %167 = vmatprep.subr.mxu0 0.0
    %168 = vmatpush2.msra.mxu0 0.0
    %169 = vmatprep.subr.mxu0 0.0
    %170 = vmatpush2.msra.mxu0 0.0
    %171 = vmatprep.mubr.f32.mxu0 0.0
    %172 = vmatmul.mubr.f32.gmra.mxu0 %v90
    %v173 = vpop.f32.mrf.mxu0
    %v174 = vadd.f32 0.0, %v173
    %v175 = vpop.f32.mrf.mxu0
    %176 = vdwg.mxu0
    %v177 = vld [vmem:[#allocation9] sm:$0x1]
    %v178 = vlaneseq
    %v179 = vshrl.u32 %v178, 7
    %v180 = vsub.s32 0, %v179
    %v181 = vrot.slane %v177, %v180
    %v182 = vmul.f32 %v174, %v181
    %v183 = vld [vmem:[#allocation11] sm:$0x1]
    %v184 = vlaneseq
    %v185 = vshrl.u32 %v184, 7
    %v186 = vsub.s32 0, %v185
    %v187 = vrot.slane %v183, %v186
    %v188 = vadd.f32 %v182, %v187
    %v189 = vmax.f32 %v188, 0.0
    %v190 = vld [vmem:[#allocation8 + $0x80] sm:$0xff]
    %v191 = vld [vmem:[#allocation8 + $0x88] sm:$0xff]
    %v192 = vld [vmem:[#allocation8 + $0x90] sm:$0xff]
    %v193 = vld [vmem:[#allocation8 + $0x98] sm:$0xff]
    %v194 = vld [vmem:[#allocation8 + $0xa0] sm:$0xff]
    %v195 = vld [vmem:[#allocation8 + $0xa8] sm:$0xff]
    %v196 = vld [vmem:[#allocation8 + $0xb0] sm:$0xff]
    %v197 = vld [vmem:[#allocation8 + $0xb8] sm:$0xff]
    %v198 = vld [vmem:[#allocation8 + $0xc0] sm:$0xff]
    %v199 = vld [vmem:[#allocation8 + $0xc8] sm:$0xff]
    %v200 = vld [vmem:[#allocation8 + $0xd0] sm:$0xff]
    %v201 = vld [vmem:[#allocation8 + $0xd8] sm:$0xff]
    %v202 = vld [vmem:[#allocation8 + $0xe0] sm:$0xff]
    %v203 = vld [vmem:[#allocation8 + $0xe8] sm:$0xff]
    %v204 = vld [vmem:[#allocation8 + $0xf0] sm:$0xff]
    %v205 = vld [vmem:[#allocation8 + $0xf8] sm:$0xff]
    %206 = vmatprep.subr.mxu0 0.0
    %207 = vmatpush1.msra.mxu0 %v205
    %208 = vmatprep.subr.mxu0 0.0
    %209 = vmatpush1.msra.mxu0 %v204
    %210 = vmatprep.subr.mxu0 0.0
    %211 = vmatpush1.msra.mxu0 %v203
    %212 = vmatprep.subr.mxu0 0.0
    %213 = vmatpush1.msra.mxu0 %v202
    %214 = vmatprep.subr.mxu0 0.0
    %215 = vmatpush1.msra.mxu0 %v201
    %216 = vmatprep.subr.mxu0 0.0
    %217 = vmatpush1.msra.mxu0 %v200
    %218 = vmatprep.subr.mxu0 0.0
    %219 = vmatpush1.msra.mxu0 %v199
    %220 = vmatprep.subr.mxu0 0.0
    %221 = vmatpush1.msra.mxu0 %v198
    %222 = vmatprep.subr.mxu0 0.0
    %223 = vmatpush1.msra.mxu0 %v197
    %224 = vmatprep.subr.mxu0 0.0
    %225 = vmatpush1.msra.mxu0 %v196
    %226 = vmatprep.subr.mxu0 0.0
    %227 = vmatpush1.msra.mxu0 %v195
    %228 = vmatprep.subr.mxu0 0.0
    %229 = vmatpush1.msra.mxu0 %v194
    %230 = vmatprep.subr.mxu0 0.0
    %231 = vmatpush1.msra.mxu0 %v193
    %232 = vmatprep.subr.mxu0 0.0
    %233 = vmatpush1.msra.mxu0 %v192
    %234 = vmatprep.subr.mxu0 0.0
    %235 = vmatpush1.msra.mxu0 %v191
    %236 = vmatprep.subr.mxu0 0.0
    %237 = vmatpush1.msra.mxu0 %v190
    %238 = vmatprep.subr.mxu0 0.0
    %239 = vmatpush2.msra.mxu0 0.0
    %240 = vmatprep.subr.mxu0 0.0
    %241 = vmatpush2.msra.mxu0 0.0
    %242 = vmatprep.subr.mxu0 0.0
    %243 = vmatpush2.msra.mxu0 0.0
    %244 = vmatprep.subr.mxu0 0.0
    %245 = vmatpush2.msra.mxu0 0.0
    %246 = vmatprep.subr.mxu0 0.0
    %247 = vmatpush2.msra.mxu0 0.0
    %248 = vmatprep.subr.mxu0 0.0
    %249 = vmatpush2.msra.mxu0 0.0
    %250 = vmatprep.subr.mxu0 0.0
    %251 = vmatpush2.msra.mxu0 0.0
    %252 = vmatprep.subr.mxu0 0.0
    %253 = vmatpush2.msra.mxu0 0.0
    %254 = vmatprep.subr.mxu0 0.0
    %255 = vmatpush2.msra.mxu0 0.0
    %256 = vmatprep.subr.mxu0 0.0
    %257 = vmatpush2.msra.mxu0 0.0
    %258 = vmatprep.subr.mxu0 0.0
    %259 = vmatpush2.msra.mxu0 0.0
    %260 = vmatprep.subr.mxu0 0.0
    %261 = vmatpush2.msra.mxu0 0.0
    %262 = vmatprep.subr.mxu0 0.0
    %263 = vmatpush2.msra.mxu0 0.0
    %264 = vmatprep.subr.mxu0 0.0
    %265 = vmatpush2.msra.mxu0 0.0
    %266 = vmatprep.subr.mxu0 0.0
    %267 = vmatpush2.msra.mxu0 0.0
    %268 = vmatprep.subr.mxu0 0.0
    %269 = vmatpush2.msra.mxu0 0.0
    %270 = vmatprep.mubr.f32.mxu0 0.0
    %271 = vmatmul.mubr.f32.gmra.mxu0 %v189
    %v272 = vpop.f32.mrf.mxu0
    %v273 = vadd.f32 0.0, %v272
    %v274 = vpop.f32.mrf.mxu0
    %275 = vdwg.mxu0
    %v276 = vld [vmem:[#allocation9 + $0x1] sm:$0x1]
    %v277 = vlaneseq
    %v278 = vshrl.u32 %v277, 7
    %v279 = vsub.s32 0, %v278
    %v280 = vrot.slane %v276, %v279
    %v281 = vmul.f32 %v273, %v280
    %v282 = vld [vmem:[#allocation11 + $0x1] sm:$0x1]
    %v283 = vlaneseq
    %v284 = vshrl.u32 %v283, 7
    %v285 = vsub.s32 0, %v284
    %v286 = vrot.slane %v282, %v285
    %v287 = vadd.f32 %v281, %v286
    %v288 = vmax.f32 %v287, 0.0
    %v289 = vld [vmem:[#allocation8 + $0x100] sm:$0xff]
    %v290 = vld [vmem:[#allocation8 + $0x108] sm:$0xff]
    %v291 = vld [vmem:[#allocation8 + $0x110] sm:$0xff]
    %v292 = vld [vmem:[#allocation8 + $0x118] sm:$0xff]
    %v293 = vld [vmem:[#allocation8 + $0x120] sm:$0xff]
    %v294 = vld [vmem:[#allocation8 + $0x128] sm:$0xff]
    %v295 = vld [vmem:[#allocation8 + $0x130] sm:$0xff]
    %v296 = vld [vmem:[#allocation8 + $0x138] sm:$0xff]
    %v297 = vld [vmem:[#allocation8 + $0x140] sm:$0xff]
    %v298 = vld [vmem:[#allocation8 + $0x148] sm:$0xff]
    %v299 = vld [vmem:[#allocation8 + $0x150] sm:$0xff]
    %v300 = vld [vmem:[#allocation8 + $0x158] sm:$0xff]
    %v301 = vld [vmem:[#allocation8 + $0x160] sm:$0xff]
    %v302 = vld [vmem:[#allocation8 + $0x168] sm:$0xff]
    %v303 = vld [vmem:[#allocation8 + $0x170] sm:$0xff]
    %v304 = vld [vmem:[#allocation8 + $0x178] sm:$0xff]
    %305 = vmatprep.subr.mxu0 0.0
    %306 = vmatpush1.msra.mxu0 %v304
    %307 = vmatprep.subr.mxu0 0.0
    %308 = vmatpush1.msra.mxu0 %v303
    %309 = vmatprep.subr.mxu0 0.0
    %310 = vmatpush1.msra.mxu0 %v302
    %311 = vmatprep.subr.mxu0 0.0
    %312 = vmatpush1.msra.mxu0 %v301
    %313 = vmatprep.subr.mxu0 0.0
    %314 = vmatpush1.msra.mxu0 %v300
    %315 = vmatprep.subr.mxu0 0.0
    %316 = vmatpush1.msra.mxu0 %v299
    %317 = vmatprep.subr.mxu0 0.0
    %318 = vmatpush1.msra.mxu0 %v298
    %319 = vmatprep.subr.mxu0 0.0
    %320 = vmatpush1.msra.mxu0 %v297
    %321 = vmatprep.subr.mxu0 0.0
    %322 = vmatpush1.msra.mxu0 %v296
    %323 = vmatprep.subr.mxu0 0.0
    %324 = vmatpush1.msra.mxu0 %v295
    %325 = vmatprep.subr.mxu0 0.0
    %326 = vmatpush1.msra.mxu0 %v294
    %327 = vmatprep.subr.mxu0 0.0
    %328 = vmatpush1.msra.mxu0 %v293
    %329 = vmatprep.subr.mxu0 0.0
    %330 = vmatpush1.msra.mxu0 %v292
    %331 = vmatprep.subr.mxu0 0.0
    %332 = vmatpush1.msra.mxu0 %v291
    %333 = vmatprep.subr.mxu0 0.0
    %334 = vmatpush1.msra.mxu0 %v290
    %335 = vmatprep.subr.mxu0 0.0
    %336 = vmatpush1.msra.mxu0 %v289
    %337 = vmatprep.subr.mxu0 0.0
    %338 = vmatpush2.msra.mxu0 0.0
    %339 = vmatprep.subr.mxu0 0.0
    %340 = vmatpush2.msra.mxu0 0.0
    %341 = vmatprep.subr.mxu0 0.0
    %342 = vmatpush2.msra.mxu0 0.0
    %343 = vmatprep.subr.mxu0 0.0
    %344 = vmatpush2.msra.mxu0 0.0
    %345 = vmatprep.subr.mxu0 0.0
    %346 = vmatpush2.msra.mxu0 0.0
    %347 = vmatprep.subr.mxu0 0.0
    %348 = vmatpush2.msra.mxu0 0.0
    %349 = vmatprep.subr.mxu0 0.0
    %350 = vmatpush2.msra.mxu0 0.0
    %351 = vmatprep.subr.mxu0 0.0
    %352 = vmatpush2.msra.mxu0 0.0
    %353 = vmatprep.subr.mxu0 0.0
    %354 = vmatpush2.msra.mxu0 0.0
    %355 = vmatprep.subr.mxu0 0.0
    %356 = vmatpush2.msra.mxu0 0.0
    %357 = vmatprep.subr.mxu0 0.0
    %358 = vmatpush2.msra.mxu0 0.0
    %359 = vmatprep.subr.mxu0 0.0
    %360 = vmatpush2.msra.mxu0 0.0
    %361 = vmatprep.subr.mxu0 0.0
    %362 = vmatpush2.msra.mxu0 0.0
    %363 = vmatprep.subr.mxu0 0.0
    %364 = vmatpush2.msra.mxu0 0.0
    %365 = vmatprep.subr.mxu0 0.0
    %366 = vmatpush2.msra.mxu0 0.0
    %367 = vmatprep.subr.mxu0 0.0
    %368 = vmatpush2.msra.mxu0 0.0
    %369 = vmatprep.mubr.f32.mxu0 0.0
    %370 = vmatmul.mubr.f32.gmra.mxu0 %v288
    %v371 = vpop.f32.mrf.mxu0
    %v372 = vadd.f32 0.0, %v371
    %v373 = vpop.f32.mrf.mxu0
    %374 = vdwg.mxu0
    %v375 = vld [vmem:[#allocation9 + $0x2] sm:$0x1]
    %v376 = vlaneseq
    %v377 = vshrl.u32 %v376, 7
    %v378 = vsub.s32 0, %v377
    %v379 = vrot.slane %v375, %v378
    %v380 = vmul.f32 %v372, %v379
    %v381 = vld [vmem:[#allocation11 + $0x2] sm:$0x1]
    %v382 = vlaneseq
    %v383 = vshrl.u32 %v382, 7
    %v384 = vsub.s32 0, %v383
    %v385 = vrot.slane %v381, %v384
    %v386 = vadd.f32 %v380, %v385
    %v387 = vmax.f32 %v386, 0.0
    %v388 = vld [vmem:[#allocation8 + $0x180] sm:$0xff]
    %v389 = vld [vmem:[#allocation8 + $0x188] sm:$0xff]
    %v390 = vld [vmem:[#allocation8 + $0x190] sm:$0xff]
    %v391 = vld [vmem:[#allocation8 + $0x198] sm:$0xff]
    %v392 = vld [vmem:[#allocation8 + $0x1a0] sm:$0xff]
    %v393 = vld [vmem:[#allocation8 + $0x1a8] sm:$0xff]
    %v394 = vld [vmem:[#allocation8 + $0x1b0] sm:$0xff]
    %v395 = vld [vmem:[#allocation8 + $0x1b8] sm:$0xff]
    %v396 = vld [vmem:[#allocation8 + $0x1c0] sm:$0xff]
    %v397 = vld [vmem:[#allocation8 + $0x1c8] sm:$0xff]
    %v398 = vld [vmem:[#allocation8 + $0x1d0] sm:$0xff]
    %v399 = vld [vmem:[#allocation8 + $0x1d8] sm:$0xff]
    %v400 = vld [vmem:[#allocation8 + $0x1e0] sm:$0xff]
    %v401 = vld [vmem:[#allocation8 + $0x1e8] sm:$0xff]
    %v402 = vld [vmem:[#allocation8 + $0x1f0] sm:$0xff]
    %v403 = vld [vmem:[#allocation8 + $0x1f8] sm:$0xff]
    %404 = vmatprep.subr.mxu0 0.0
    %405 = vmatpush1.msra.mxu0 %v403
    %406 = vmatprep.subr.mxu0 0.0
    %407 = vmatpush1.msra.mxu0 %v402
    %408 = vmatprep.subr.mxu0 0.0
    %409 = vmatpush1.msra.mxu0 %v401
    %410 = vmatprep.subr.mxu0 0.0
    %411 = vmatpush1.msra.mxu0 %v400
    %412 = vmatprep.subr.mxu0 0.0
    %413 = vmatpush1.msra.mxu0 %v399
    %414 = vmatprep.subr.mxu0 0.0
    %415 = vmatpush1.msra.mxu0 %v398
    %416 = vmatprep.subr.mxu0 0.0
    %417 = vmatpush1.msra.mxu0 %v397
    %418 = vmatprep.subr.mxu0 0.0
    %419 = vmatpush1.msra.mxu0 %v396
    %420 = vmatprep.subr.mxu0 0.0
    %421 = vmatpush1.msra.mxu0 %v395
    %422 = vmatprep.subr.mxu0 0.0
    %423 = vmatpush1.msra.mxu0 %v394
    %424 = vmatprep.subr.mxu0 0.0
    %425 = vmatpush1.msra.mxu0 %v393
    %426 = vmatprep.subr.mxu0 0.0
    %427 = vmatpush1.msra.mxu0 %v392
    %428 = vmatprep.subr.mxu0 0.0
    %429 = vmatpush1.msra.mxu0 %v391
    %430 = vmatprep.subr.mxu0 0.0
    %431 = vmatpush1.msra.mxu0 %v390
    %432 = vmatprep.subr.mxu0 0.0
    %433 = vmatpush1.msra.mxu0 %v389
    %434 = vmatprep.subr.mxu0 0.0
    %435 = vmatpush1.msra.mxu0 %v388
    %436 = vmatprep.subr.mxu0 0.0
    %437 = vmatpush2.msra.mxu0 0.0
    %438 = vmatprep.subr.mxu0 0.0
    %439 = vmatpush2.msra.mxu0 0.0
    %440 = vmatprep.subr.mxu0 0.0
    %441 = vmatpush2.msra.mxu0 0.0
    %442 = vmatprep.subr.mxu0 0.0
    %443 = vmatpush2.msra.mxu0 0.0
    %444 = vmatprep.subr.mxu0 0.0
    %445 = vmatpush2.msra.mxu0 0.0
    %446 = vmatprep.subr.mxu0 0.0
    %447 = vmatpush2.msra.mxu0 0.0
    %448 = vmatprep.subr.mxu0 0.0
    %449 = vmatpush2.msra.mxu0 0.0
    %450 = vmatprep.subr.mxu0 0.0
    %451 = vmatpush2.msra.mxu0 0.0
    %452 = vmatprep.subr.mxu0 0.0
    %453 = vmatpush2.msra.mxu0 0.0
    %454 = vmatprep.subr.mxu0 0.0
    %455 = vmatpush2.msra.mxu0 0.0
    %456 = vmatprep.subr.mxu0 0.0
    %457 = vmatpush2.msra.mxu0 0.0
    %458 = vmatprep.subr.mxu0 0.0
    %459 = vmatpush2.msra.mxu0 0.0
    %460 = vmatprep.subr.mxu0 0.0
    %461 = vmatpush2.msra.mxu0 0.0
    %462 = vmatprep.subr.mxu0 0.0
    %463 = vmatpush2.msra.mxu0 0.0
    %464 = vmatprep.subr.mxu0 0.0
    %465 = vmatpush2.msra.mxu0 0.0
    %466 = vmatprep.subr.mxu0 0.0
    %467 = vmatpush2.msra.mxu0 0.0
    %468 = vmatprep.mubr.f32.mxu0 0.0
    %469 = vmatmul.mubr.f32.gmra.mxu0 %v387
    %v470 = vpop.f32.mrf.mxu0
    %v471 = vadd.f32 0.0, %v470
    %v472 = vpop.f32.mrf.mxu0
    %473 = vdwg.mxu0
    %v474 = vld [vmem:[#allocation9 + $0x3] sm:$0x1]
    %v475 = vlaneseq
    %v476 = vshrl.u32 %v475, 7
    %v477 = vsub.s32 0, %v476
    %v478 = vrot.slane %v474, %v477
    %v479 = vmul.f32 %v471, %v478
    %v480 = vld [vmem:[#allocation11 + $0x3] sm:$0x1]
    %v481 = vlaneseq
    %v482 = vshrl.u32 %v481, 7
    %v483 = vsub.s32 0, %v482
    %v484 = vrot.slane %v480, %v483
    %v485 = vadd.f32 %v479, %v484
    %vm486 = vcmp.ge.s32.totalorder %v81, 36
    %v487 = vsel %vm486, %v485, 0.0
    %vm488 = vcmp.lt.s32.totalorder %v81, 8
    %v489 = vsel %vm488, %v485, 0.0
    %v490 = vmul.f32 %v489, 0.5
    %v491 = vmul.f32 %v490, 1.442695
    %v492 = vpow.pop %v491
    %v493 = vld [vmem:[#allocation3] sm:$0xff]
    %v494 = vmul.f32 %v493, %v492
    %v495 = vadd.f32 %v494, %v487
    %v496 = vld [vmem:[#allocation8 + $0x200] sm:$0xff]
    %v497 = vld [vmem:[#allocation8 + $0x208] sm:$0xff]
    %v498 = vld [vmem:[#allocation8 + $0x210] sm:$0xff]
    %v499 = vld [vmem:[#allocation8 + $0x218] sm:$0xff]
    %v500 = vld [vmem:[#allocation8 + $0x220] sm:$0xff]
    %v501 = vld [vmem:[#allocation8 + $0x228] sm:$0xff]
    %v502 = vld [vmem:[#allocation8 + $0x230] sm:$0xff]
    %v503 = vld [vmem:[#allocation8 + $0x238] sm:$0xff]
    %v504 = vld [vmem:[#allocation8 + $0x240] sm:$0xff]
    %v505 = vld [vmem:[#allocation8 + $0x248] sm:$0xff]
    %v506 = vld [vmem:[#allocation8 + $0x250] sm:$0xff]
    %v507 = vld [vmem:[#allocation8 + $0x258] sm:$0xff]
    %v508 = vld [vmem:[#allocation8 + $0x260] sm:$0xff]
    %v509 = vld [vmem:[#allocation8 + $0x268] sm:$0xff]
    %v510 = vld [vmem:[#allocation8 + $0x270] sm:$0xff]
    %v511 = vld [vmem:[#allocation8 + $0x278] sm:$0xff]
    %512 = vmatprep.subr.mxu0 0.0
    %513 = vmatpush1.msra.mxu0 %v511
    %514 = vmatprep.subr.mxu0 0.0
    %515 = vmatpush1.msra.mxu0 %v510
    %516 = vmatprep.subr.mxu0 0.0
    %517 = vmatpush1.msra.mxu0 %v509
    %518 = vmatprep.subr.mxu0 0.0
    %519 = vmatpush1.msra.mxu0 %v508
    %520 = vmatprep.subr.mxu0 0.0
    %521 = vmatpush1.msra.mxu0 %v507
    %522 = vmatprep.subr.mxu0 0.0
    %523 = vmatpush1.msra.mxu0 %v506
    %524 = vmatprep.subr.mxu0 0.0
    %525 = vmatpush1.msra.mxu0 %v505
    %526 = vmatprep.subr.mxu0 0.0
    %527 = vmatpush1.msra.mxu0 %v504
    %528 = vmatprep.subr.mxu0 0.0
    %529 = vmatpush1.msra.mxu0 %v503
    %530 = vmatprep.subr.mxu0 0.0
    %531 = vmatpush1.msra.mxu0 %v502
    %532 = vmatprep.subr.mxu0 0.0
    %533 = vmatpush1.msra.mxu0 %v501
    %534 = vmatprep.subr.mxu0 0.0
    %535 = vmatpush1.msra.mxu0 %v500
    %536 = vmatprep.subr.mxu0 0.0
    %537 = vmatpush1.msra.mxu0 %v499
    %538 = vmatprep.subr.mxu0 0.0
    %539 = vmatpush1.msra.mxu0 %v498
    %540 = vmatprep.subr.mxu0 0.0
    %541 = vmatpush1.msra.mxu0 %v497
    %542 = vmatprep.subr.mxu0 0.0
    %543 = vmatpush1.msra.mxu0 %v496
    %544 = vmatprep.subr.mxu0 0.0
    %545 = vmatpush2.msra.mxu0 0.0
    %546 = vmatprep.subr.mxu0 0.0
    %547 = vmatpush2.msra.mxu0 0.0
    %548 = vmatprep.subr.mxu0 0.0
    %549 = vmatpush2.msra.mxu0 0.0
    %550 = vmatprep.subr.mxu0 0.0
    %551 = vmatpush2.msra.mxu0 0.0
    %552 = vmatprep.subr.mxu0 0.0
    %553 = vmatpush2.msra.mxu0 0.0
    %554 = vmatprep.subr.mxu0 0.0
    %555 = vmatpush2.msra.mxu0 0.0
    %556 = vmatprep.subr.mxu0 0.0
    %557 = vmatpush2.msra.mxu0 0.0
    %558 = vmatprep.subr.mxu0 0.0
    %559 = vmatpush2.msra.mxu0 0.0
    %560 = vmatprep.subr.mxu0 0.0
    %561 = vmatpush2.msra.mxu0 0.0
    %562 = vmatprep.subr.mxu0 0.0
    %563 = vmatpush2.msra.mxu0 0.0
    %564 = vmatprep.subr.mxu0 0.0
    %565 = vmatpush2.msra.mxu0 0.0
    %566 = vmatprep.subr.mxu0 0.0
    %567 = vmatpush2.msra.mxu0 0.0
    %568 = vmatprep.subr.mxu0 0.0
    %569 = vmatpush2.msra.mxu0 0.0
    %570 = vmatprep.subr.mxu0 0.0
    %571 = vmatpush2.msra.mxu0 0.0
    %572 = vmatprep.subr.mxu0 0.0
    %573 = vmatpush2.msra.mxu0 0.0
    %574 = vmatprep.subr.mxu0 0.0
    %575 = vmatpush2.msra.mxu0 0.0
    %576 = vmatprep.mubr.f32.mxu0 0.0
    %577 = vmatmul.mubr.f32.gmra.mxu0 %v495
    %v578 = vpop.f32.mrf.mxu0
    %v579 = vadd.f32 0.0, %v578
    %v580 = vpop.f32.mrf.mxu0
    %581 = vdwg.mxu0
    %v582 = vld [vmem:[#allocation9 + $0x4] sm:$0x1]
    %v583 = vlaneseq
    %v584 = vshrl.u32 %v583, 7
    %v585 = vsub.s32 0, %v584
    %v586 = vrot.slane %v582, %v585
    %v587 = vmul.f32 %v579, %v586
    %v588 = vld [vmem:[#allocation11 + $0x4] sm:$0x1]
    %v589 = vlaneseq
    %v590 = vshrl.u32 %v589, 7
    %v591 = vsub.s32 0, %v590
    %v592 = vrot.slane %v588, %v591
    %v593 = vadd.f32 %v587, %v592
    %v594 = vmax.f32 %v593, 0.0
    %v595 = vld [vmem:[#allocation8 + $0x280] sm:$0xff]
    %v596 = vld [vmem:[#allocation8 + $0x288] sm:$0xff]
    %v597 = vld [vmem:[#allocation8 + $0x290] sm:$0xff]
    %v598 = vld [vmem:[#allocation8 + $0x298] sm:$0xff]
    %v599 = vld [vmem:[#allocation8 + $0x2a0] sm:$0xff]
    %v600 = vld [vmem:[#allocation8 + $0x2a8] sm:$0xff]
    %v601 = vld [vmem:[#allocation8 + $0x2b0] sm:$0xff]
    %v602 = vld [vmem:[#allocation8 + $0x2b8] sm:$0xff]
    %v603 = vld [vmem:[#allocation8 + $0x2c0] sm:$0xff]
    %v604 = vld [vmem:[#allocation8 + $0x2c8] sm:$0xff]
    %v605 = vld [vmem:[#allocation8 + $0x2d0] sm:$0xff]
    %v606 = vld [vmem:[#allocation8 + $0x2d8] sm:$0xff]
    %v607 = vld [vmem:[#allocation8 + $0x2e0] sm:$0xff]
    %v608 = vld [vmem:[#allocation8 + $0x2e8] sm:$0xff]
    %v609 = vld [vmem:[#allocation8 + $0x2f0] sm:$0xff]
    %v610 = vld [vmem:[#allocation8 + $0x2f8] sm:$0xff]
    %611 = vmatprep.subr.mxu0 0.0
    %612 = vmatpush1.msra.mxu0 %v610
    %613 = vmatprep.subr.mxu0 0.0
    %614 = vmatpush1.msra.mxu0 %v609
    %615 = vmatprep.subr.mxu0 0.0
    %616 = vmatpush1.msra.mxu0 %v608
    %617 = vmatprep.subr.mxu0 0.0
    %618 = vmatpush1.msra.mxu0 %v607
    %619 = vmatprep.subr.mxu0 0.0
    %620 = vmatpush1.msra.mxu0 %v606
    %621 = vmatprep.subr.mxu0 0.0
    %622 = vmatpush1.msra.mxu0 %v605
    %623 = vmatprep.subr.mxu0 0.0
    %624 = vmatpush1.msra.mxu0 %v604
    %625 = vmatprep.subr.mxu0 0.0
    %626 = vmatpush1.msra.mxu0 %v603
    %627 = vmatprep.subr.mxu0 0.0
    %628 = vmatpush1.msra.mxu0 %v602
    %629 = vmatprep.subr.mxu0 0.0
    %630 = vmatpush1.msra.mxu0 %v601
    %631 = vmatprep.subr.mxu0 0.0
    %632 = vmatpush1.msra.mxu0 %v600
    %633 = vmatprep.subr.mxu0 0.0
    %634 = vmatpush1.msra.mxu0 %v599
    %635 = vmatprep.subr.mxu0 0.0
    %636 = vmatpush1.msra.mxu0 %v598
    %637 = vmatprep.subr.mxu0 0.0
    %638 = vmatpush1.msra.mxu0 %v597
    %639 = vmatprep.subr.mxu0 0.0
    %640 = vmatpush1.msra.mxu0 %v596
    %641 = vmatprep.subr.mxu0 0.0
    %642 = vmatpush1.msra.mxu0 %v595
    %643 = vmatprep.subr.mxu0 0.0
    %644 = vmatpush2.msra.mxu0 0.0
    %645 = vmatprep.subr.mxu0 0.0
    %646 = vmatpush2.msra.mxu0 0.0
    %647 = vmatprep.subr.mxu0 0.0
    %648 = vmatpush2.msra.mxu0 0.0
    %649 = vmatprep.subr.mxu0 0.0
    %650 = vmatpush2.msra.mxu0 0.0
    %651 = vmatprep.subr.mxu0 0.0
    %652 = vmatpush2.msra.mxu0 0.0
    %653 = vmatprep.subr.mxu0 0.0
    %654 = vmatpush2.msra.mxu0 0.0
    %655 = vmatprep.subr.mxu0 0.0
    %656 = vmatpush2.msra.mxu0 0.0
    %657 = vmatprep.subr.mxu0 0.0
    %658 = vmatpush2.msra.mxu0 0.0
    %659 = vmatprep.subr.mxu0 0.0
    %660 = vmatpush2.msra.mxu0 0.0
    %661 = vmatprep.subr.mxu0 0.0
    %662 = vmatpush2.msra.mxu0 0.0
    %663 = vmatprep.subr.mxu0 0.0
    %664 = vmatpush2.msra.mxu0 0.0
    %665 = vmatprep.subr.mxu0 0.0
    %666 = vmatpush2.msra.mxu0 0.0
    %667 = vmatprep.subr.mxu0 0.0
    %668 = vmatpush2.msra.mxu0 0.0
    %669 = vmatprep.subr.mxu0 0.0
    %670 = vmatpush2.msra.mxu0 0.0
    %671 = vmatprep.subr.mxu0 0.0
    %672 = vmatpush2.msra.mxu0 0.0
    %673 = vmatprep.subr.mxu0 0.0
    %674 = vmatpush2.msra.mxu0 0.0
    %675 = vmatprep.mubr.f32.mxu0 0.0
    %676 = vmatmul.mubr.f32.gmra.mxu0 %v594
    %v677 = vpop.f32.mrf.mxu0
    %v678 = vadd.f32 0.0, %v677
    %v679 = vpop.f32.mrf.mxu0
    %680 = vdwg.mxu0
    %v681 = vld [vmem:[#allocation9 + $0x5] sm:$0x1]
    %v682 = vlaneseq
    %v683 = vshrl.u32 %v682, 7
    %v684 = vsub.s32 0, %v683
    %v685 = vrot.slane %v681, %v684
    %v686 = vmul.f32 %v678, %v685
    %v687 = vld [vmem:[#allocation11 + $0x5] sm:$0x1]
    %v688 = vlaneseq
    %v689 = vshrl.u32 %v688, 7
    %v690 = vsub.s32 0, %v689
    %v691 = vrot.slane %v687, %v690
    %v692 = vadd.f32 %v686, %v691
    %v693 = vmax.f32 %v692, 0.0
    %v694 = vld [vmem:[#allocation8 + $0x300] sm:$0xff]
    %v695 = vld [vmem:[#allocation8 + $0x308] sm:$0xff]
    %v696 = vld [vmem:[#allocation8 + $0x310] sm:$0xff]
    %v697 = vld [vmem:[#allocation8 + $0x318] sm:$0xff]
    %v698 = vld [vmem:[#allocation8 + $0x320] sm:$0xff]
    %v699 = vld [vmem:[#allocation8 + $0x328] sm:$0xff]
    %v700 = vld [vmem:[#allocation8 + $0x330] sm:$0xff]
    %v701 = vld [vmem:[#allocation8 + $0x338] sm:$0xff]
    %v702 = vld [vmem:[#allocation8 + $0x340] sm:$0xff]
    %v703 = vld [vmem:[#allocation8 + $0x348] sm:$0xff]
    %v704 = vld [vmem:[#allocation8 + $0x350] sm:$0xff]
    %v705 = vld [vmem:[#allocation8 + $0x358] sm:$0xff]
    %v706 = vld [vmem:[#allocation8 + $0x360] sm:$0xff]
    %v707 = vld [vmem:[#allocation8 + $0x368] sm:$0xff]
    %v708 = vld [vmem:[#allocation8 + $0x370] sm:$0xff]
    %v709 = vld [vmem:[#allocation8 + $0x378] sm:$0xff]
    %710 = vmatprep.subr.mxu0 0.0
    %711 = vmatpush1.msra.mxu0 %v709
    %712 = vmatprep.subr.mxu0 0.0
    %713 = vmatpush1.msra.mxu0 %v708
    %714 = vmatprep.subr.mxu0 0.0
    %715 = vmatpush1.msra.mxu0 %v707
    %716 = vmatprep.subr.mxu0 0.0
    %717 = vmatpush1.msra.mxu0 %v706
    %718 = vmatprep.subr.mxu0 0.0
    %719 = vmatpush1.msra.mxu0 %v705
    %720 = vmatprep.subr.mxu0 0.0
    %721 = vmatpush1.msra.mxu0 %v704
    %722 = vmatprep.subr.mxu0 0.0
    %723 = vmatpush1.msra.mxu0 %v703
    %724 = vmatprep.subr.mxu0 0.0
    %725 = vmatpush1.msra.mxu0 %v702
    %726 = vmatprep.subr.mxu0 0.0
    %727 = vmatpush1.msra.mxu0 %v701
    %728 = vmatprep.subr.mxu0 0.0
    %729 = vmatpush1.msra.mxu0 %v700
    %730 = vmatprep.subr.mxu0 0.0
    %731 = vmatpush1.msra.mxu0 %v699
    %732 = vmatprep.subr.mxu0 0.0
    %733 = vmatpush1.msra.mxu0 %v698
    %734 = vmatprep.subr.mxu0 0.0
    %735 = vmatpush1.msra.mxu0 %v697
    %736 = vmatprep.subr.mxu0 0.0
    %737 = vmatpush1.msra.mxu0 %v696
    %738 = vmatprep.subr.mxu0 0.0
    %739 = vmatpush1.msra.mxu0 %v695
    %740 = vmatprep.subr.mxu0 0.0
    %741 = vmatpush1.msra.mxu0 %v694
    %742 = vmatprep.subr.mxu0 0.0
    %743 = vmatpush2.msra.mxu0 0.0
    %744 = vmatprep.subr.mxu0 0.0
    %745 = vmatpush2.msra.mxu0 0.0
    %746 = vmatprep.subr.mxu0 0.0
    %747 = vmatpush2.msra.mxu0 0.0
    %748 = vmatprep.subr.mxu0 0.0
    %749 = vmatpush2.msra.mxu0 0.0
    %750 = vmatprep.subr.mxu0 0.0
    %751 = vmatpush2.msra.mxu0 0.0
    %752 = vmatprep.subr.mxu0 0.0
    %753 = vmatpush2.msra.mxu0 0.0
    %754 = vmatprep.subr.mxu0 0.0
    %755 = vmatpush2.msra.mxu0 0.0
    %756 = vmatprep.subr.mxu0 0.0
    %757 = vmatpush2.msra.mxu0 0.0
    %758 = vmatprep.subr.mxu0 0.0
    %759 = vmatpush2.msra.mxu0 0.0
    %760 = vmatprep.subr.mxu0 0.0
    %761 = vmatpush2.msra.mxu0 0.0
    %762 = vmatprep.subr.mxu0 0.0
    %763 = vmatpush2.msra.mxu0 0.0
    %764 = vmatprep.subr.mxu0 0.0
    %765 = vmatpush2.msra.mxu0 0.0
    %766 = vmatprep.subr.mxu0 0.0
    %767 = vmatpush2.msra.mxu0 0.0
    %768 = vmatprep.subr.mxu0 0.0
    %769 = vmatpush2.msra.mxu0 0.0
    %770 = vmatprep.subr.mxu0 0.0
    %771 = vmatpush2.msra.mxu0 0.0
    %772 = vmatprep.subr.mxu0 0.0
    %773 = vmatpush2.msra.mxu0 0.0
    %774 = vmatprep.mubr.f32.mxu0 0.0
    %775 = vmatmul.mubr.f32.gmra.mxu0 %v693
    %v776 = vpop.f32.mrf.mxu0
    %v777 = vadd.f32 0.0, %v776
    %v778 = vpop.f32.mrf.mxu0
    %779 = vdwg.mxu0
    %v780 = vld [vmem:[#allocation9 + $0x6] sm:$0x1]
    %v781 = vlaneseq
    %v782 = vshrl.u32 %v781, 7
    %v783 = vsub.s32 0, %v782
    %v784 = vrot.slane %v780, %v783
    %v785 = vmul.f32 %v777, %v784
    %v786 = vld [vmem:[#allocation11 + $0x6] sm:$0x1]
    %v787 = vlaneseq
    %v788 = vshrl.u32 %v787, 7
    %v789 = vsub.s32 0, %v788
    %v790 = vrot.slane %v786, %v789
    %v791 = vadd.f32 %v785, %v790
    %v792 = vmax.f32 %v791, 0.0
    %v793 = vld [vmem:[#allocation8 + $0x380] sm:$0xff]
    %v794 = vld [vmem:[#allocation8 + $0x388] sm:$0xff]
    %v795 = vld [vmem:[#allocation8 + $0x390] sm:$0xff]
    %v796 = vld [vmem:[#allocation8 + $0x398] sm:$0xff]
    %v797 = vld [vmem:[#allocation8 + $0x3a0] sm:$0xff]
    %v798 = vld [vmem:[#allocation8 + $0x3a8] sm:$0xff]
    %v799 = vld [vmem:[#allocation8 + $0x3b0] sm:$0xff]
    %v800 = vld [vmem:[#allocation8 + $0x3b8] sm:$0xff]
    %v801 = vld [vmem:[#allocation8 + $0x3c0] sm:$0xff]
    %v802 = vld [vmem:[#allocation8 + $0x3c8] sm:$0xff]
    %v803 = vld [vmem:[#allocation8 + $0x3d0] sm:$0xff]
    %v804 = vld [vmem:[#allocation8 + $0x3d8] sm:$0xff]
    %v805 = vld [vmem:[#allocation8 + $0x3e0] sm:$0xff]
    %v806 = vld [vmem:[#allocation8 + $0x3e8] sm:$0xff]
    %v807 = vld [vmem:[#allocation8 + $0x3f0] sm:$0xff]
    %v808 = vld [vmem:[#allocation8 + $0x3f8] sm:$0xff]
    %809 = vmatprep.subr.mxu0 0.0
    %810 = vmatpush1.msra.mxu0 %v808
    %811 = vmatprep.subr.mxu0 0.0
    %812 = vmatpush1.msra.mxu0 %v807
    %813 = vmatprep.subr.mxu0 0.0
    %814 = vmatpush1.msra.mxu0 %v806
    %815 = vmatprep.subr.mxu0 0.0
    %816 = vmatpush1.msra.mxu0 %v805
    %817 = vmatprep.subr.mxu0 0.0
    %818 = vmatpush1.msra.mxu0 %v804
    %819 = vmatprep.subr.mxu0 0.0
    %820 = vmatpush1.msra.mxu0 %v803
    %821 = vmatprep.subr.mxu0 0.0
    %822 = vmatpush1.msra.mxu0 %v802
    %823 = vmatprep.subr.mxu0 0.0
    %824 = vmatpush1.msra.mxu0 %v801
    %825 = vmatprep.subr.mxu0 0.0
    %826 = vmatpush1.msra.mxu0 %v800
    %827 = vmatprep.subr.mxu0 0.0
    %828 = vmatpush1.msra.mxu0 %v799
    %829 = vmatprep.subr.mxu0 0.0
    %830 = vmatpush1.msra.mxu0 %v798
    %831 = vmatprep.subr.mxu0 0.0
    %832 = vmatpush1.msra.mxu0 %v797
    %833 = vmatprep.subr.mxu0 0.0
    %834 = vmatpush1.msra.mxu0 %v796
    %835 = vmatprep.subr.mxu0 0.0
    %836 = vmatpush1.msra.mxu0 %v795
    %837 = vmatprep.subr.mxu0 0.0
    %838 = vmatpush1.msra.mxu0 %v794
    %839 = vmatprep.subr.mxu0 0.0
    %840 = vmatpush1.msra.mxu0 %v793
    %841 = vmatprep.subr.mxu0 0.0
    %842 = vmatpush2.msra.mxu0 0.0
    %843 = vmatprep.subr.mxu0 0.0
    %844 = vmatpush2.msra.mxu0 0.0
    %845 = vmatprep.subr.mxu0 0.0
    %846 = vmatpush2.msra.mxu0 0.0
    %847 = vmatprep.subr.mxu0 0.0
    %848 = vmatpush2.msra.mxu0 0.0
    %849 = vmatprep.subr.mxu0 0.0
    %850 = vmatpush2.msra.mxu0 0.0
    %851 = vmatprep.subr.mxu0 0.0
    %852 = vmatpush2.msra.mxu0 0.0
    %853 = vmatprep.subr.mxu0 0.0
    %854 = vmatpush2.msra.mxu0 0.0
    %855 = vmatprep.subr.mxu0 0.0
    %856 = vmatpush2.msra.mxu0 0.0
    %857 = vmatprep.subr.mxu0 0.0
    %858 = vmatpush2.msra.mxu0 0.0
    %859 = vmatprep.subr.mxu0 0.0
    %860 = vmatpush2.msra.mxu0 0.0
    %861 = vmatprep.subr.mxu0 0.0
    %862 = vmatpush2.msra.mxu0 0.0
    %863 = vmatprep.subr.mxu0 0.0
    %864 = vmatpush2.msra.mxu0 0.0
    %865 = vmatprep.subr.mxu0 0.0
    %866 = vmatpush2.msra.mxu0 0.0
    %867 = vmatprep.subr.mxu0 0.0
    %868 = vmatpush2.msra.mxu0 0.0
    %869 = vmatprep.subr.mxu0 0.0
    %870 = vmatpush2.msra.mxu0 0.0
    %871 = vmatprep.subr.mxu0 0.0
    %872 = vmatpush2.msra.mxu0 0.0
    %873 = vmatprep.mubr.f32.mxu0 0.0
    %874 = vmatmul.mubr.f32.gmra.mxu0 %v792
    %v875 = vpop.f32.mrf.mxu0
    %v876 = vadd.f32 0.0, %v875
    %v877 = vpop.f32.mrf.mxu0
    %878 = vdwg.mxu0
    %v879 = vld [vmem:[#allocation9 + $0x7] sm:$0x1]
    %v880 = vlaneseq
    %v881 = vshrl.u32 %v880, 7
    %v882 = vsub.s32 0, %v881
    %v883 = vrot.slane %v879, %v882
    %v884 = vmul.f32 %v876, %v883
    %v885 = vld [vmem:[#allocation11 + $0x7] sm:$0x1]
    %v886 = vlaneseq
    %v887 = vshrl.u32 %v886, 7
    %v888 = vsub.s32 0, %v887
    %v889 = vrot.slane %v885, %v888
    %v890 = vadd.f32 %v884, %v889
    %vm891 = vcmp.ge.s32.totalorder %v81, 20
    %vm892 = vcmp.le.s32.totalorder %v81, 23
    %vm893 = vmand %vm891, %vm892
    %vm894 = vcmp.ge.s32.totalorder %v81, 24
    %vm895 = vcmp.le.s32.totalorder %v81, 28
    %vm896 = vmand %vm894, %vm895
    %vm897 = vmor %vm893, %vm896
    %vm898 = vcmp.ge.s32.totalorder %v81, 29
    %vm899 = vcmp.le.s32.totalorder %v81, 35
    %vm900 = vmand %vm898, %vm899
    %vm901 = vmor %vm897, %vm900
    %v902 = vsub.f32 0.0, %v890
    %v903 = vmul.f32 %v902, 1.442695
    %v904 = vpow.pop %v903
    %v905 = vadd.f32 %v904, 1.0
    %v906 = vrcp.pop %v905
    %v907 = vmul.f32 1.0, %v906
    %v908 = vsel %vm901, %v907, %v890
    %v909 = vadd.f32 %v908, %v487
    %910 = vst [vmem:[%s5] sm:$0xff] %v909
    // Predicated region
    $region42: #{vae_forward.1} parent=1 // pred_check
      _
    $region43: #{vae_forward.1} parent=1 // pred_check_branch
      %912 = sbr.rel (0) target = $region45
    $region44: #{vae_forward.1} parent=1 // pred_region
      _
    $region45: #{vae_forward.1} parent=1 // pred_fallthru
      _
    // Predicated region
    $region46: #{vae_forward.1} parent=1 // pred_check
      _
    $region47: #{vae_forward.1} parent=1 // pred_check_branch
      %914 = sbr.rel (0) target = $region49
    $region48: #{vae_forward.1} parent=1 // pred_region
      _
    $region49: #{vae_forward.1} parent=1 // pred_fallthru
      _
    %915 = vsyncpa [#allocation5], 1
    %916 = vsyncpa [#allocation7], 1
    %917 = vsyncpa [#allocation10], 1

</llo_original>
